<compile_context>
chip_gen: v6e
topology: v6e:2x2x1
jax: 0.10.0
libtpu: 0.0.40
codegen_flags: <defaults>
</compile_context>

<pallas_src>
import functools

import jax
import jax.numpy as jnp
from jax.experimental import pallas as pl
from jax.experimental.pallas import tpu as pltpu

_LANE = 128  # TPU lane width


def _round_up(x, m):
    return ((x + m - 1) // m) * m


# ----------------------------------------------------------------------------
# Kernel
# ----------------------------------------------------------------------------
def _fused_feature_kernel(x_ref, w_ref, b_ref, ov_ref, opi_ref, *, hp):
    """One MXU push over the fused [S, 2*hp] weight.

    x_ref  : [tb, S]      f32 activation tile
    w_ref  : [S, 2*hp]    bf16 fused weight (v branch lanes [0, hp), pi [hp, 2hp))
    b_ref  : [1, 2*hp]    f32 fused bias
    ov_ref : [tb, hp]     f32 tanh output, v branch   (lane-dense store)
    opi_ref: [tb, hp]     f32 tanh output, pi branch  (lane-dense store)
    """
    xb = x_ref[...].astype(w_ref.dtype)                       # f32 -> bf16 (VPU)
    h = jnp.dot(xb, w_ref[...], preferred_element_type=jnp.float32)  # MXU, f32 acc
    h = jnp.tanh(h + b_ref[...])                              # VPU + EUP, f32
    # Split on a 128-aligned boundary -> both stores are unmasked/lane-dense.
    ov_ref[...] = h[:, :hp].astype(ov_ref.dtype)
    opi_ref[...] = h[:, hp:].astype(opi_ref.dtype)


# ----------------------------------------------------------------------------
# One-time parameter preparation (NOT on the per-forward path)
# ----------------------------------------------------------------------------
def prepare_feature_extractor_params(w_v, b_v, w_pi, b_pi,
                                     *, weight_dtype=jnp.bfloat16):
    """Fuse + lane-pad + cast the two Linear layers once, at init time.

    w_* : [S, H] f32 (pre-transposed PyTorch Linear weight), b_* : [1, H] f32.
    Returns a dict holding the fused bf16 weight [S, 2*hp], f32 bias [1, 2*hp],
    and static sizes. hp = round_up(H, 128) so each branch is lane-aligned.
    """
    S, H = w_v.shape
    hp = _round_up(H, _LANE)
    pad = hp - H

    def pad_cols(a):
        return jnp.pad(a, ((0, 0), (0, pad))) if pad else a

    w_fused = jnp.concatenate([pad_cols(w_v), pad_cols(w_pi)], axis=1)
    b_fused = jnp.concatenate([pad_cols(b_v), pad_cols(b_pi)], axis=1)
    return dict(
        w=w_fused.astype(weight_dtype),        # [S, 2*hp] bf16, resident weight
        b=b_fused.astype(jnp.float32),         # [1, 2*hp] f32
        state_size=S,
        hidden_size=H,
        hp=hp,
    )


# ----------------------------------------------------------------------------
# Batch tile selection (megacore + VMEM aware)
# ----------------------------------------------------------------------------
def _choose_batch_tile(B, S, hp, *, max_tb=512, vmem_budget=24 << 20):
    if B <= 8:
        return B                                # single tiny block, full dims
    tb = min(_round_up(B, 8), max_tb)
    # v7x megacore: the "parallel" grid axis only uses the 2nd TensorCore if
    # there are >= 2 blocks, so split non-trivial batches in two.
    if pl.cdiv(B, tb) < 2 and B > 16:
        tb = min(_round_up(pl.cdiv(B, 2), 8), max_tb)

    # Conservative VMEM check: double-buffered x tile + both f32 output tiles
    # must stay well under the scoped limit (v7x: 64 MiB physical VMEM).
    def tile_bytes(t):
        return 2 * t * S * 4 + 2 * (2 * t * hp * 4)

    while tb > 8 and tile_bytes(tb) > vmem_budget:
        tb = max(8, (tb // 2) // 8 * 8)
    return tb


# ----------------------------------------------------------------------------
# Forward
# ----------------------------------------------------------------------------
def feature_extractor_fwd(x, params):
    """x: [B, S] f32 -> (features_v [B, H], features_pi [B, H]), both f32."""
    B, S = x.shape
    assert S == params["state_size"]
    H = params["hidden_size"]
    hp = params["hp"]
    w, b = params["w"], params["b"]

    tb = _choose_batch_tile(B, S, hp)
    nb = pl.cdiv(B, tb)

    kernel = functools.partial(_fused_feature_kernel, hp=hp)

    flops = 2 * B * S * (2 * hp) + 4 * B * (2 * hp)
    bytes_accessed = (B * S * 4                                  # x read
                      + int(w.size) * jnp.dtype(w.dtype).itemsize  # weight read
                      + int(b.size) * 4                          # bias read
                      + 2 * B * hp * 4)                          # outputs write

    out_v, out_pi = pl.pallas_call(
        kernel,
        out_shape=(
            jax.ShapeDtypeStruct((B, hp), x.dtype),
            jax.ShapeDtypeStruct((B, hp), x.dtype),
        ),
        grid_spec=pltpu.PrefetchScalarGridSpec(
            num_scalar_prefetch=0,
            grid=(nb,),
            in_specs=[
                pl.BlockSpec((tb, S), lambda i: (i, 0)),        # x batch tile
                pl.BlockSpec((S, 2 * hp), lambda i: (0, 0)),    # fused weight (resident)
                pl.BlockSpec((1, 2 * hp), lambda i: (0, 0)),    # fused bias (resident)
            ],
            out_specs=[
                pl.BlockSpec((tb, hp), lambda i: (i, 0)),       # features_v tile
                pl.BlockSpec((tb, hp), lambda i: (i, 0)),       # features_pi tile
            ],
        ),
        compiler_params=pltpu.CompilerParams(
            dimension_semantics=("parallel",),                  # megacore over batch
        ),
        cost_estimate=pl.CostEstimate(
            flops=flops,
            transcendentals=2 * B * hp,
            bytes_accessed=bytes_accessed,
        ),
    )(x, w, b)

    # TODO(synk): downstream DDPG heads could consume the lane-padded [B, hp]
    # outputs directly (or be fused into this kernel) to avoid this slice.
    if hp == H:
        return out_v, out_pi
    return out_v[:, :H], out_pi[:, :H]


# ----------------------------------------------------------------------------
# Init helper mimicking nn.Linear's U(-1/sqrt(fan_in), 1/sqrt(fan_in))
# ----------------------------------------------------------------------------
def init_linear_params(key, in_features, out_features):
    k_w, k_b = jax.random.split(key)
    bound = 1.0 / jnp.sqrt(jnp.float32(in_features))
    # Stored as [in, out] (transposed vs PyTorch's [out, in]) for x @ W.
    w = jax.random.uniform(k_w, (in_features, out_features),
                           minval=-bound, maxval=bound, dtype=jnp.float32)
    b = jax.random.uniform(k_b, (1, out_features),
                           minval=-bound, maxval=bound, dtype=jnp.float32)
    return w, b


if __name__ == "__main__":
    key = jax.random.PRNGKey(0)
    k_x, k_v, k_pi = jax.random.split(key, 3)

    batch = 8
    state_size = 16
    hidden_size = 32

    x = jax.random.normal(k_x, (batch, state_size), dtype=jnp.float32)
    w_v, b_v = init_linear_params(k_v, state_size, hidden_size)
    w_pi, b_pi = init_linear_params(k_pi, state_size, hidden_size)

    # One-time parameter prep (fuse + pad + bf16 cast) — outside the hot path.
    params = prepare_feature_extractor_params(w_v, b_v, w_pi, b_pi)

    feats_v, feats_pi = feature_extractor_fwd(x, params)
    jax.block_until_ready((feats_v, feats_pi))

    # Reference check against plain JAX f32 (same math as PyTorch Linear+Tanh).
    # Tolerance covers bf16 weight/activation rounding with f32 accumulation.
    ref_v = jnp.tanh(x @ w_v + b_v)
    ref_pi = jnp.tanh(x @ w_pi + b_pi)
    assert feats_v.shape == (batch, hidden_size)
    assert feats_pi.shape == (batch, hidden_size)
    assert jnp.allclose(feats_v, ref_v, atol=5e-2), "features_v mismatch"
    assert jnp.allclose(feats_pi, ref_pi, atol=5e-2), "features_pi mismatch"

    print("KERNEL_OK")
</pallas_src>

<mosaic_0001>
module attributes {stable_mosaic.version = 11 : i64} {
  func.func @_fused_feature_kernel(%arg0: i32, %arg1: memref<8x16xf32, #tpu.memory_space<vmem>>, %arg2: memref<16x256xbf16, #tpu.memory_space<vmem>>, %arg3: memref<1x256xf32, #tpu.memory_space<vmem>>, %arg4: memref<8x128xf32, #tpu.memory_space<vmem>>, %arg5: memref<8x128xf32, #tpu.memory_space<vmem>>) attributes {dimension_semantics = [#tpu.dimension_semantics<parallel>], iteration_bounds = array<i64: 1>, scalar_prefetch = 0 : i64, scratch_operands = 0 : i64, tpu.core_type = #tpu.core_type<tc>, window_params = [{transform_indices = @transform_0, window_bounds = array<i64: 8, 16>}, {pipeline_mode = #tpu.pipeline_mode<synchronous>, transform_indices = @transform_1, window_bounds = array<i64: 16, 256>}, {pipeline_mode = #tpu.pipeline_mode<synchronous>, transform_indices = @transform_2, window_bounds = array<i64: 1, 256>}, {transform_indices = @transform_3, window_bounds = array<i64: 8, 128>}, {transform_indices = @transform_4, window_bounds = array<i64: 8, 128>}]} {
    %c0 = arith.constant 0 : index
    %c0_0 = arith.constant 0 : index
    %0 = vector.load %arg1[%c0, %c0_0] : memref<8x16xf32, #tpu.memory_space<vmem>>, vector<8x16xf32>
    %1 = arith.truncf %0 : vector<8x16xf32> to vector<8x16xbf16>
    %c0_1 = arith.constant 0 : index
    %c0_2 = arith.constant 0 : index
    %2 = vector.load %arg2[%c0_1, %c0_2] : memref<16x256xbf16, #tpu.memory_space<vmem>>, vector<16x256xbf16>
    %cst = arith.constant dense<0.000000e+00> : vector<8x256xf32>
    %3 = tpu.matmul %1, %2, %cst {dimension_numbers = #tpu.dot_dimension_numbers<[1], [0], [0], [1], [0, 0, 1, 1], [], []>} : vector<8x16xbf16>, vector<16x256xbf16>, vector<8x256xf32> -> vector<8x256xf32>
    %c0_3 = arith.constant 0 : index
    %c0_4 = arith.constant 0 : index
    %4 = vector.load %arg3[%c0_3, %c0_4] : memref<1x256xf32, #tpu.memory_space<vmem>>, vector<1x256xf32>
    %5 = vector.broadcast %4 : vector<1x256xf32> to vector<8x256xf32>
    %6 = arith.addf %3, %5 : vector<8x256xf32>
    %7 = math.tanh %6 : vector<8x256xf32>
    %8 = vector.extract_strided_slice %7 {offsets = [0, 0], sizes = [8, 128], strides = [1, 1]} : vector<8x256xf32> to vector<8x128xf32>
    %c0_5 = arith.constant 0 : index
    %c0_6 = arith.constant 0 : index
    %9 = vector.load %arg4[%c0_5, %c0_6] : memref<8x128xf32, #tpu.memory_space<vmem>>, vector<8x128xf32>
    tpu.vector_store %arg4[%c0_5, %c0_6], %8 {strides = array<i32>} : memref<8x128xf32, #tpu.memory_space<vmem>>, vector<8x128xf32>,
    %10 = vector.extract_strided_slice %7 {offsets = [0, 128], sizes = [8, 128], strides = [1, 1]} : vector<8x256xf32> to vector<8x128xf32>
    %c0_7 = arith.constant 0 : index
    %c0_8 = arith.constant 0 : index
    %11 = vector.load %arg5[%c0_7, %c0_8] : memref<8x128xf32, #tpu.memory_space<vmem>>, vector<8x128xf32>
    tpu.vector_store %arg5[%c0_7, %c0_8], %10 {strides = array<i32>} : memref<8x128xf32, #tpu.memory_space<vmem>>, vector<8x128xf32>,
    return
  }
  func.func @transform_0(%arg0: i32) -> (i32, i32) {
    %c0_i32 = arith.constant 0 : i32
    %c0_i32_0 = arith.constant 0 : i32
    return %arg0, %c0_i32 : i32, i32
  }
  func.func @transform_1(%arg0: i32) -> (i32, i32) {
    %c0_i32 = arith.constant 0 : i32
    %c0_i32_0 = arith.constant 0 : i32
    %c0_i32_1 = arith.constant 0 : i32
    return %c0_i32, %c0_i32_0 : i32, i32
  }
  func.func @transform_2(%arg0: i32) -> (i32, i32) {
    %c0_i32 = arith.constant 0 : i32
    %c0_i32_0 = arith.constant 0 : i32
    %c0_i32_1 = arith.constant 0 : i32
    return %c0_i32, %c0_i32_0 : i32, i32
  }
  func.func @transform_3(%arg0: i32) -> (i32, i32) {
    %c0_i32 = arith.constant 0 : i32
    %c0_i32_0 = arith.constant 0 : i32
    return %arg0, %c0_i32 : i32, i32
  }
  func.func @transform_4(%arg0: i32) -> (i32, i32) {
    %c0_i32 = arith.constant 0 : i32
    %c0_i32_0 = arith.constant 0 : i32
    return %arg0, %c0_i32 : i32, i32
  }
}

</mosaic_0001>

<llo_original>
// kernel: tpu_custom_call.1
$region0: #{tpu_custom_call.1}
  #allocation0 [shape = 'u32[]', space=smem, size = 0x4, offset = 0x4, fixed_abs, tag = 'smem constant byte address 0x4 - core index']
  #allocation1 [shape = 'u32[144,128]{1,0:T(1,128)}', space=vmem, size = 0x12000, scoped, tag = 'internal scratch']
  %s0 = inlined_call_operand.hbm [shape: f32[8,16], index: 0, kind: input, shape index: {}]
  %s1 = inlined_call_operand.hbm [shape: bf16[16,256], index: 1, kind: input, shape index: {}]
  %s2 = inlined_call_operand.vmem [shape: f32[1,256], index: 2, kind: input, shape index: {}]
  %s3 = inlined_call_operand.hbm [shape: f32[8,128], index: 3, kind: output, shape index: {0}]
  %s4 = inlined_call_operand.hbm [shape: f32[8,128], index: 4, kind: output, shape index: {1}]
  %5 = xla_tuple %s3, %s4
  %s6 = sld [smem:[#allocation0]]
  $region38: #{tpu_custom_call.1} parent=0
    _
  %s8 = ssub.s32 1, %s6
  %s9 = scalar_select 0, %s8, %s6
  $region1: #{tpu_custom_call.1} parent=0
    #allocation2 [shape = 'u8[4096]{0}', space=vmem, size = 0x1000, scoped, tag = 'input window, operand 0, single buffered']
    #allocation3 [shape = 's32[1]{0}', space=sflag, size = 0x4, scoped, tag = 'scoped memory for tpu_custom_call.1']
    #allocation4 [shape = 's32[1]{0}', space=sflag, size = 0x4, scoped, tag = 'scoped memory for tpu_custom_call.1']
    #allocation5 [shape = 'u8[8192]{0}', space=vmem, size = 0x2000, scoped, tag = 'input window, operand 1, single buffered']
    #allocation6 [shape = 's32[1]{0}', space=sflag, size = 0x4, scoped, tag = 'scoped memory for tpu_custom_call.1']
    #allocation7 [shape = 'u8[4096]{0}', space=vmem, size = 0x1000, scoped, tag = 'output window, operand 0, single buffered']
    #allocation8 [shape = 'u8[4096]{0}', space=vmem, size = 0x1000, scoped, tag = 'output window, operand 1, single buffered']
    #allocation9 [shape = 's32[1]{0}', space=sflag, size = 0x4, scoped, tag = 'scoped memory for tpu_custom_call.1']
    %10 = vsyncpa [#allocation3], 0
    %11 = vsyncpa [#allocation6], 0
    %12 = vsyncpa [#allocation4], 0
    %13 = vsyncpa [#allocation9], 0
    // Predicated region
    $region2: #{tpu_custom_call.1} parent=1 // pred_check
      _
    $region3: #{tpu_custom_call.1} parent=1 // pred_check_branch
      %15 = sbr.rel (0) target = $region5
    $region4: #{tpu_custom_call.1} parent=1 // pred_region
      %s17 = ssub.s32 128, 128
      %18 = vsyncadd [#allocation3], %s17
      %s20 = sshll.u32 [#allocation2], 4
      %s21 = int_to_ptr.vmem [resolvable:$true] %s20
      %23 = dma.hbm_to_vmem [thread:$0]  %s0, 128, %s21, [#allocation3]
    $region5: #{tpu_custom_call.1} parent=1 // pred_fallthru
      _
    // Predicated region
    $region6: #{tpu_custom_call.1} parent=1 // pred_check
      _
    $region7: #{tpu_custom_call.1} parent=1 // pred_check_branch
      %25 = sbr.rel (0) target = $region9
    $region8: #{tpu_custom_call.1} parent=1 // pred_region
      %s27 = ssub.s32 256, 256
      %28 = vsyncadd [#allocation6], %s27
      %s29 = sshll.u32 [#allocation5], 4
      %s30 = int_to_ptr.vmem [resolvable:$true] %s29
      %35 = dma.hbm_to_vmem [thread:$0]  %s1, 256, %s30, [#allocation6], 128, 128, 8
    $region9: #{tpu_custom_call.1} parent=1 // pred_fallthru
      _
    // Predicated region
    $region10: #{tpu_custom_call.1} parent=1 // pred_check
      _
    $region11: #{tpu_custom_call.1} parent=1 // pred_check_branch
      %37 = sbr.rel (0) target = $region13
    $region12: #{tpu_custom_call.1} parent=1 // pred_region
      _
    $region13: #{tpu_custom_call.1} parent=1 // pred_fallthru
      _
    // Predicated region
    $region14: #{tpu_custom_call.1} parent=1 // pred_check
      _
    $region15: #{tpu_custom_call.1} parent=1 // pred_check_branch
      %39 = sbr.rel (0) target = $region17
    $region16: #{tpu_custom_call.1} parent=1 // pred_region
      %40 = dma.done [#allocation3], 128
    $region17: #{tpu_custom_call.1} parent=1 // pred_fallthru
      _
    // Predicated region
    $region18: #{tpu_custom_call.1} parent=1 // pred_check
      _
    $region19: #{tpu_custom_call.1} parent=1 // pred_check_branch
      %42 = sbr.rel (0) target = $region21
    $region20: #{tpu_custom_call.1} parent=1 // pred_region
      %43 = dma.done [#allocation6], 256
    $region21: #{tpu_custom_call.1} parent=1 // pred_fallthru
      _
    %v45 = vld [vmem:[#allocation2] sm:$0xff]
    %v46 = vpack.c.bf16 %v45, %v45
    %v47 = vld [vmem:[#allocation5] sm:$0xff]
    %v48 = vld [vmem:[#allocation5 + $0x8] sm:$0xff]
    %v49 = vld [vmem:[%s2] sm:$0x3]
    %v51 = vlaneseq
    %v52 = vshrl.u32 %v51, 7
    %v53 = vsub.s32 0, %v52
    %v54 = vrot.slane %v49, %v53
    %v55 = vlaneseq
    %v56 = vshrl.u32 %v55, 7
    %v57 = vsub.s32 1, %v56
    %v58 = vrot.slane %v49, %v57
    %v63 = vunpack.c.l.b16 %v47
    %v64 = vunpack.c.h.b16 %v47
    %v65 = vunpack.c.l.b16 %v48
    %v66 = vunpack.c.h.b16 %v48
    %v67 = vpack.c.b16 %v65, %v63
    %v68 = vpack.c.b16 %v66, %v64
    %vm71 = vcmask 130048
    %v73 = vsel %vm71, %v46, 0
    %75 = vmatprep.subr.bf16.mxu0 0
    %76 = vmatpush1.bf16.msra.mxu0 0
    %77 = vmatprep.subr.bf16.mxu0 0
    %78 = vmatpush1.bf16.msra.mxu0 0
    %79 = vmatprep.subr.bf16.mxu0 0
    %80 = vmatpush1.bf16.msra.mxu0 0
    %81 = vmatprep.subr.bf16.mxu0 0
    %82 = vmatpush1.bf16.msra.mxu0 0
    %83 = vmatprep.subr.bf16.mxu0 0
    %84 = vmatpush1.bf16.msra.mxu0 0
    %85 = vmatprep.subr.bf16.mxu0 0
    %86 = vmatpush1.bf16.msra.mxu0 0
    %87 = vmatprep.subr.bf16.mxu0 0
    %88 = vmatpush1.bf16.msra.mxu0 0
    %89 = vmatprep.subr.bf16.mxu0 %v68
    %90 = vmatpush1.bf16.msra.mxu0 %v67
    %91 = vmatprep.subr.bf16.mxu0 0
    %92 = vmatpush2.bf16.msra.mxu0 0
    %93 = vmatprep.subr.bf16.mxu0 0
    %94 = vmatpush2.bf16.msra.mxu0 0
    %95 = vmatprep.subr.bf16.mxu0 0
    %96 = vmatpush2.bf16.msra.mxu0 0
    %97 = vmatprep.subr.bf16.mxu0 0
    %98 = vmatpush2.bf16.msra.mxu0 0
    %99 = vmatprep.subr.bf16.mxu0 0
    %100 = vmatpush2.bf16.msra.mxu0 0
    %101 = vmatprep.subr.bf16.mxu0 0
    %102 = vmatpush2.bf16.msra.mxu0 0
    %103 = vmatprep.subr.bf16.mxu0 0
    %104 = vmatpush2.bf16.msra.mxu0 0
    %105 = vmatprep.subr.bf16.mxu0 0
    %106 = vmatpush2.bf16.msra.mxu0 0
    %107 = vmatprep.mubr.bf16.mxu0 0
    %108 = vmatmul.mubr.bf16.gmra.mxu0 %v73
    %v109 = vpop.f32.mrf.mxu0
    %v110 = vadd.f32 %v54, %v109
    %v111 = vpop.f32.mrf.mxu0
    %v112 = vadd.f32 %v58, %v111
    %v113 = vpop.f32.mrf.mxu0
    %v114 = vpop.f32.mrf.mxu0
    %115 = vdwg.mxu0
    %v116 = vtanh.pop %v110
    %v117 = vtanh.pop %v112
    %118 = vst [vmem:[#allocation7] sm:$0xff] %v116
    %119 = vst [vmem:[#allocation8] sm:$0xff] %v117
    // Predicated region
    $region22: #{tpu_custom_call.1} parent=1 // pred_check
      _
    $region23: #{tpu_custom_call.1} parent=1 // pred_check_branch
      %121 = sbr.rel (0) target = $region25
    $region24: #{tpu_custom_call.1} parent=1 // pred_region
      %s123 = ssub.s32 128, 128
      %124 = vsyncadd [#allocation4], %s123
      %s126 = sshll.u32 [#allocation7], 4
      %s127 = int_to_ptr.vmem [resolvable:$true] %s126
      %129 = dma.vmem_to_hbm [thread:$0]  %s127, 128, %s3, [#allocation4]
    $region25: #{tpu_custom_call.1} parent=1 // pred_fallthru
      _
    // Predicated region
    $region26: #{tpu_custom_call.1} parent=1 // pred_check
      _
    $region27: #{tpu_custom_call.1} parent=1 // pred_check_branch
      %131 = sbr.rel (0) target = $region29
    $region28: #{tpu_custom_call.1} parent=1 // pred_region
      %s133 = ssub.s32 128, 128
      %134 = vsyncadd [#allocation9], %s133
      %s136 = sshll.u32 [#allocation8], 4
      %s137 = int_to_ptr.vmem [resolvable:$true] %s136
      %139 = dma.vmem_to_hbm [thread:$0]  %s137, 128, %s4, [#allocation9]
    $region29: #{tpu_custom_call.1} parent=1 // pred_fallthru
      _
    // Predicated region
    $region30: #{tpu_custom_call.1} parent=1 // pred_check
      _
    $region31: #{tpu_custom_call.1} parent=1 // pred_check_branch
      %141 = sbr.rel (0) target = $region33
    $region32: #{tpu_custom_call.1} parent=1 // pred_region
      %142 = dma.done [#allocation4], 128
    $region33: #{tpu_custom_call.1} parent=1 // pred_fallthru
      _
    // Predicated region
    $region34: #{tpu_custom_call.1} parent=1 // pred_check
      _
    $region35: #{tpu_custom_call.1} parent=1 // pred_check_branch
      %144 = sbr.rel (0) target = $region37
    $region36: #{tpu_custom_call.1} parent=1 // pred_region
      %145 = dma.done [#allocation9], 128
    $region37: #{tpu_custom_call.1} parent=1 // pred_fallthru
      _
    %146 = vsyncpa [#allocation3], 1
    %147 = vsyncpa [#allocation6], 1
    %148 = vsyncpa [#allocation4], 1
    %149 = vsyncpa [#allocation9], 1

</llo_original>
